<compile_context>
chip_gen: v5e
topology: v5e:2x2
jax: 0.10.0
libtpu: 0.0.40
codegen_flags: <defaults>
</compile_context>

<pallas_src>
import jax
import jax.numpy as jnp
from jax.experimental import pallas as pl
from jax.experimental.pallas import tpu as pltpu


def _round_up(x: int, m: int) -> int:
    return ((x + m - 1) // m) * m


def _model_kernel(x_ref, w1_ref, b1_ref, w2_ref, b2_ref, o_ref):
    # ---- layernorm over last dim (eps=1e-5, no affine), f32 elementwise ----
    x = x_ref[...].astype(jnp.float32)
    mean = jnp.mean(x, axis=-1, keepdims=True)
    xc = x - mean
    var = jnp.mean(xc * xc, axis=-1, keepdims=True)
    xn = xc * jax.lax.rsqrt(var + 1e-5)

    # ---- linear: dim -> dim. Cast only the dot operands to the weight dtype
    # (bf16) so the MXU runs at its bf16 rate; accumulate in f32; exact f32 bias.
    h = jnp.dot(xn.astype(w1_ref.dtype), w1_ref[...],
                preferred_element_type=jnp.float32) + b1_ref[...]

    # ---- softmax over last dim (numerically stable, EUP approx reciprocal) ----
    m = jnp.max(h, axis=-1, keepdims=True)
    p = jnp.exp(h - m)
    s = p * pl.reciprocal(jnp.sum(p, axis=-1, keepdims=True), approx=True)

    # ---- output linear: dim -> num_classes (lane-dense zero-padded columns) ----
    out = jnp.dot(s.astype(w2_ref.dtype), w2_ref[...],
                  preferred_element_type=jnp.float32) + b2_ref[...]
    o_ref[...] = out.astype(o_ref.dtype)


def simple_triton_model(x, w1, b1, w2, b2, *, block_m=512,
                        matmul_dtype=jnp.bfloat16,
                        vmem_budget_bytes=48 * 1024 * 1024):
    """x: [N, dim]; w1: [dim, dim]; b1: [1, dim]; w2: [dim, C]; b2: [1, C]."""
    n, dim = x.shape
    num_classes = w2.shape[1]

    # Weights in bf16 (halves weight DMA + resident VMEM, full MXU rate);
    # biases stay f32 so the adds are exact.
    w1c = w1.astype(matmul_dtype)
    w2c = w2.astype(matmul_dtype)

    # Lane-dense padded class dim (unmasked vst, clean MXU output dim);
    # zero columns leave valid outputs unchanged and are sliced off below.
    c_pad = max(128, _round_up(num_classes, 128))
    w2p = jnp.pad(w2c, ((0, 0), (0, c_pad - num_classes)))
    b2p = jnp.pad(b2, ((0, 0), (0, c_pad - num_classes)))

    # Row tile: large (512) to sit near the HBM roofline, but
    #  * at most ceil(n/2) (8-aligned) so the "parallel" grid has >= 2 steps
    #    (v7x has 2 TensorCores; a single-step grid leaves one idle),
    #  * small enough that 2x x-tile + 2x out-tile + single-buffered resident
    #    weights fit a v7x-safe VMEM budget.
    def _bytes(a):
        return a.size * a.dtype.itemsize

    resident = _bytes(w1c) + _bytes(b1) + _bytes(w2p) + _bytes(b2p)
    bm = max(8, min(block_m, _round_up(pl.cdiv(n, 2), 8)))

    def _tile_bytes(bm_):
        return 2 * bm_ * dim * x.dtype.itemsize + 2 * bm_ * c_pad * 4

    while bm > 8 and resident + _tile_bytes(bm) > vmem_budget_bytes:
        bm = max(8, _round_up(bm // 2, 8))

    # No wrapper-side pad of x: Pallas handles the ragged last tile. Rows are
    # fully independent (per-row layernorm/softmax), and the out-of-bounds rows
    # of the last block are never written back, so stale data there is harmless.
    grid = (pl.cdiv(n, bm),)

    vmem_limit = min(int(1.25 * (resident + _tile_bytes(bm))) + (4 << 20),
                     64 << 20)

    cost = pl.CostEstimate(
        flops=2 * n * dim * (dim + c_pad),
        transcendentals=n * (dim + 2),
        bytes_accessed=(n * dim * x.dtype.itemsize + resident + n * c_pad * 4),
    )

    resident_buf = pl.Buffered(1)  # constant index maps -> no double buffer

    out = pl.pallas_call(
        _model_kernel,
        out_shape=jax.ShapeDtypeStruct((n, c_pad), x.dtype),
        grid=grid,
        in_specs=[
            pl.BlockSpec((bm, dim), lambda i: (i, 0)),   # x: row-tiled, pipelined
            pl.BlockSpec((dim, dim), lambda i: (0, 0),   # w1: resident, 1 buffer
                         pipeline_mode=resident_buf),
            pl.BlockSpec((1, dim), lambda i: (0, 0),     # b1: resident, 1 buffer
                         pipeline_mode=resident_buf),
            pl.BlockSpec((dim, c_pad), lambda i: (0, 0), # w2 (padded): resident
                         pipeline_mode=resident_buf),
            pl.BlockSpec((1, c_pad), lambda i: (0, 0),   # b2 (padded): resident
                         pipeline_mode=resident_buf),
        ],
        out_specs=pl.BlockSpec((bm, c_pad), lambda i: (i, 0)),
        compiler_params=pltpu.CompilerParams(
            dimension_semantics=("parallel",),  # row tiles independent -> megacore
            vmem_limit_bytes=vmem_limit,
        ),
        cost_estimate=cost,
    )(x, w1c, b1, w2p, b2p)

    return out[:, :num_classes]


def _reference(x, w1, b1, w2, b2):
    xf = x.astype(jnp.float32)
    mean = jnp.mean(xf, axis=-1, keepdims=True)
    var = jnp.mean((xf - mean) ** 2, axis=-1, keepdims=True)
    xn = (xf - mean) * jax.lax.rsqrt(var + 1e-5)
    h = xn @ w1 + b1
    s = jax.nn.softmax(h, axis=-1)
    return s @ w2 + b2


if __name__ == "__main__":
    # small shapes consistent with the module: dim=32, num_classes=16, batch of 16 rows
    batch, dim, num_classes = 16, 32, 16

    key = jax.random.PRNGKey(0)
    kx, kw1, kb1, kw2, kb2 = jax.random.split(key, 5)

    x = jax.random.normal(kx, (batch, dim), dtype=jnp.float32)
    # deterministic init, stored as (in, out) = transposed vs. PyTorch nn.Linear
    w1 = jax.random.normal(kw1, (dim, dim), dtype=jnp.float32) * (1.0 / dim ** 0.5)
    b1 = jax.random.normal(kb1, (1, dim), dtype=jnp.float32) * 0.01
    w2 = jax.random.normal(kw2, (dim, num_classes), dtype=jnp.float32) * (1.0 / dim ** 0.5)
    b2 = jax.random.normal(kb2, (1, num_classes), dtype=jnp.float32) * 0.01

    out = simple_triton_model(x, w1, b1, w2, b2)
    jax.block_until_ready(out)

    ref = _reference(x, w1, b1, w2, b2)
    assert out.shape == (batch, num_classes)
    # Tolerance accounts for bf16 matmul operands (f32 accumulation) and the
    # EUP approx reciprocal in the softmax denominator; everything else is f32.
    assert jnp.allclose(out, ref, atol=3e-2, rtol=3e-2), "mismatch vs JAX reference"

    print("KERNEL_OK")
</pallas_src>

<mosaic_0001>
module attributes {stable_mosaic.version = 11 : i64} {
  func.func @_model_kernel(%arg0: i32, %arg1: memref<8x32xf32, #tpu.memory_space<vmem>>, %arg2: memref<32x32xbf16, #tpu.memory_space<vmem>>, %arg3: memref<1x32xf32, #tpu.memory_space<vmem>>, %arg4: memref<32x128xbf16, #tpu.memory_space<vmem>>, %arg5: memref<1x128xf32, #tpu.memory_space<vmem>>, %arg6: memref<8x128xf32, #tpu.memory_space<vmem>>) attributes {dimension_semantics = [#tpu.dimension_semantics<parallel>], iteration_bounds = array<i64: 2>, scalar_prefetch = 0 : i64, scratch_operands = 0 : i64, tpu.core_type = #tpu.core_type<tc>, window_params = [{transform_indices = @transform_0, window_bounds = array<i64: 8, 32>}, {pipeline_mode = #tpu.pipeline_mode<synchronous>, transform_indices = @transform_1, window_bounds = array<i64: 32, 32>}, {pipeline_mode = #tpu.pipeline_mode<synchronous>, transform_indices = @transform_2, window_bounds = array<i64: 1, 32>}, {pipeline_mode = #tpu.pipeline_mode<synchronous>, transform_indices = @transform_3, window_bounds = array<i64: 32, 128>}, {pipeline_mode = #tpu.pipeline_mode<synchronous>, transform_indices = @transform_4, window_bounds = array<i64: 1, 128>}, {transform_indices = @transform_5, window_bounds = array<i64: 8, 128>}]} {
    %c0 = arith.constant 0 : index
    %c0_0 = arith.constant 0 : index
    %0 = vector.load %arg1[%c0, %c0_0] : memref<8x32xf32, #tpu.memory_space<vmem>>, vector<8x32xf32>
    %cst = arith.constant dense<0.000000e+00> : vector<8xf32>
    %1 = vector.multi_reduction <add>, %0, %cst [1] : vector<8x32xf32> to vector<8xf32>
    %2 = vector.shape_cast %1 : vector<8xf32> to vector<8x1xf32>
    %cst_1 = arith.constant 3.200000e+01 : f32
    %3 = vector.broadcast %cst_1 : f32 to vector<8x1xf32>
    %4 = arith.divf %2, %3 : vector<8x1xf32>
    %5 = vector.broadcast %4 : vector<8x1xf32> to vector<8x32xf32>
    %6 = arith.subf %0, %5 : vector<8x32xf32>
    %7 = arith.mulf %6, %6 : vector<8x32xf32>
    %cst_2 = arith.constant dense<0.000000e+00> : vector<8xf32>
    %8 = vector.multi_reduction <add>, %7, %cst_2 [1] : vector<8x32xf32> to vector<8xf32>
    %9 = vector.shape_cast %8 : vector<8xf32> to vector<8x1xf32>
    %cst_3 = arith.constant 3.200000e+01 : f32
    %10 = vector.broadcast %cst_3 : f32 to vector<8x1xf32>
    %11 = arith.divf %9, %10 : vector<8x1xf32>
    %cst_4 = arith.constant 9.99999974E-6 : f32
    %12 = vector.broadcast %cst_4 : f32 to vector<8x1xf32>
    %13 = arith.addf %11, %12 : vector<8x1xf32>
    %14 = math.rsqrt %13 : vector<8x1xf32>
    %15 = vector.broadcast %14 : vector<8x1xf32> to vector<8x32xf32>
    %16 = arith.mulf %6, %15 : vector<8x32xf32>
    %17 = arith.truncf %16 : vector<8x32xf32> to vector<8x32xbf16>
    %c0_5 = arith.constant 0 : index
    %c0_6 = arith.constant 0 : index
    %18 = vector.load %arg2[%c0_5, %c0_6] : memref<32x32xbf16, #tpu.memory_space<vmem>>, vector<32x32xbf16>
    %cst_7 = arith.constant dense<0.000000e+00> : vector<8x32xf32>
    %19 = tpu.matmul %17, %18, %cst_7 {dimension_numbers = #tpu.dot_dimension_numbers<[1], [0], [0], [1], [0, 0, 1, 1], [], []>} : vector<8x32xbf16>, vector<32x32xbf16>, vector<8x32xf32> -> vector<8x32xf32>
    %c0_8 = arith.constant 0 : index
    %c0_9 = arith.constant 0 : index
    %20 = vector.load %arg3[%c0_8, %c0_9] : memref<1x32xf32, #tpu.memory_space<vmem>>, vector<1x32xf32>
    %21 = vector.broadcast %20 : vector<1x32xf32> to vector<8x32xf32>
    %22 = arith.addf %19, %21 : vector<8x32xf32>
    %cst_10 = arith.constant dense<0xFF800000> : vector<8xf32>
    %23 = vector.multi_reduction <maximumf>, %22, %cst_10 [1] : vector<8x32xf32> to vector<8xf32>
    %24 = vector.shape_cast %23 : vector<8xf32> to vector<8x1xf32>
    %25 = vector.broadcast %24 : vector<8x1xf32> to vector<8x32xf32>
    %26 = arith.subf %22, %25 : vector<8x32xf32>
    %27 = math.exp %26 : vector<8x32xf32>
    %cst_11 = arith.constant dense<0.000000e+00> : vector<8xf32>
    %28 = vector.multi_reduction <add>, %27, %cst_11 [1] : vector<8x32xf32> to vector<8xf32>
    %29 = vector.shape_cast %28 : vector<8xf32> to vector<8x1xf32>
    %30 = tpu.reciprocal %29 {approx = true} : vector<8x1xf32> -> vector<8x1xf32>
    %31 = vector.broadcast %30 : vector<8x1xf32> to vector<8x32xf32>
    %32 = arith.mulf %27, %31 : vector<8x32xf32>
    %33 = arith.truncf %32 : vector<8x32xf32> to vector<8x32xbf16>
    %c0_12 = arith.constant 0 : index
    %c0_13 = arith.constant 0 : index
    %34 = vector.load %arg4[%c0_12, %c0_13] : memref<32x128xbf16, #tpu.memory_space<vmem>>, vector<32x128xbf16>
    %cst_14 = arith.constant dense<0.000000e+00> : vector<8x128xf32>
    %35 = tpu.matmul %33, %34, %cst_14 {dimension_numbers = #tpu.dot_dimension_numbers<[1], [0], [0], [1], [0, 0, 1, 1], [], []>} : vector<8x32xbf16>, vector<32x128xbf16>, vector<8x128xf32> -> vector<8x128xf32>
    %c0_15 = arith.constant 0 : index
    %c0_16 = arith.constant 0 : index
    %36 = vector.load %arg5[%c0_15, %c0_16] : memref<1x128xf32, #tpu.memory_space<vmem>>, vector<1x128xf32>
    %37 = vector.broadcast %36 : vector<1x128xf32> to vector<8x128xf32>
    %38 = arith.addf %35, %37 : vector<8x128xf32>
    %c0_17 = arith.constant 0 : index
    %c0_18 = arith.constant 0 : index
    %39 = vector.load %arg6[%c0_17, %c0_18] : memref<8x128xf32, #tpu.memory_space<vmem>>, vector<8x128xf32>
    tpu.vector_store %arg6[%c0_17, %c0_18], %38 {strides = array<i32>} : memref<8x128xf32, #tpu.memory_space<vmem>>, vector<8x128xf32>,
    return
  }
  func.func @transform_0(%arg0: i32) -> (i32, i32) {
    %c0_i32 = arith.constant 0 : i32
    %c0_i32_0 = arith.constant 0 : i32
    return %arg0, %c0_i32 : i32, i32
  }
  func.func @transform_1(%arg0: i32) -> (i32, i32) {
    %c0_i32 = arith.constant 0 : i32
    %c0_i32_0 = arith.constant 0 : i32
    %c0_i32_1 = arith.constant 0 : i32
    return %c0_i32, %c0_i32_0 : i32, i32
  }
  func.func @transform_2(%arg0: i32) -> (i32, i32) {
    %c0_i32 = arith.constant 0 : i32
    %c0_i32_0 = arith.constant 0 : i32
    %c0_i32_1 = arith.constant 0 : i32
    return %c0_i32, %c0_i32_0 : i32, i32
  }
  func.func @transform_3(%arg0: i32) -> (i32, i32) {
    %c0_i32 = arith.constant 0 : i32
    %c0_i32_0 = arith.constant 0 : i32
    %c0_i32_1 = arith.constant 0 : i32
    return %c0_i32, %c0_i32_0 : i32, i32
  }
  func.func @transform_4(%arg0: i32) -> (i32, i32) {
    %c0_i32 = arith.constant 0 : i32
    %c0_i32_0 = arith.constant 0 : i32
    %c0_i32_1 = arith.constant 0 : i32
    return %c0_i32, %c0_i32_0 : i32, i32
  }
  func.func @transform_5(%arg0: i32) -> (i32, i32) {
    %c0_i32 = arith.constant 0 : i32
    %c0_i32_0 = arith.constant 0 : i32
    return %arg0, %c0_i32 : i32, i32
  }
}

</mosaic_0001>

<llo_original>
// kernel: tpu_custom_call.1
$region0: #{tpu_custom_call.1}
  #allocation0 [shape = 'u32[]', space=smem, size = 0x4, offset = 0x4, fixed_abs, tag = 'smem constant byte address 0x4 - core index']
  #allocation1 [shape = 'u32[72,128]{1,0:T(1,128)}', space=vmem, size = 0x9000, scoped, tag = 'internal scratch']
  %s0 = inlined_call_operand.hbm [shape: f32[16,32], index: 0, kind: input, shape index: {}]
  %s1 = inlined_call_operand.hbm [shape: bf16[32,32], index: 1, kind: input, shape index: {}]
  %s2 = inlined_call_operand.vmem [shape: f32[1,32], index: 2, kind: input, shape index: {}]
  %s3 = inlined_call_operand.hbm [shape: bf16[32,128], index: 3, kind: input, shape index: {}]
  %s4 = inlined_call_operand.vmem [shape: f32[1,128], index: 4, kind: input, shape index: {}]
  %s5 = inlined_call_operand.hbm [shape: f32[16,128], index: 5, kind: output, shape index: {}]
  %s6 = sld [smem:[#allocation0]]
  $region65: #{tpu_custom_call.1} parent=0
    _
  %s8 = ssub.s32 1, %s6
  %s9 = scalar_select 0, %s8, %s6
  $region1: #{tpu_custom_call.1} parent=0
    #allocation2 [shape = 'u8[8192]{0}', space=vmem, size = 0x2000, scoped, tag = 'input window, operand 0']
    #allocation3 [shape = 's32[2]{0}', space=sflag, size = 0x8, scoped, tag = 'scoped memory for tpu_custom_call.1']
    #allocation4 [shape = 's32[2]{0}', space=sflag, size = 0x8, scoped, tag = 'scoped memory for tpu_custom_call.1']
    #allocation5 [shape = 'u8[8192]{0}', space=vmem, size = 0x2000, scoped, tag = 'input window, operand 1, single buffered']
    #allocation6 [shape = 's32[1]{0}', space=sflag, size = 0x4, scoped, tag = 'scoped memory for tpu_custom_call.1']
    #allocation7 [shape = 'u8[8192]{0}', space=vmem, size = 0x2000, scoped, tag = 'input window, operand 3, single buffered']
    #allocation8 [shape = 'u8[8192]{0}', space=vmem, size = 0x2000, scoped, tag = 'output window, operand 0']
    %10 = vsyncpa [#allocation3], 0
    %s11 = scalar_lea.sflag [#allocation3], 1
    %12 = vsyncpa %s11, 0
    %13 = vsyncpa [#allocation6], 0
    %14 = vsyncpa [#allocation4], 0
    %s15 = scalar_lea.sflag [#allocation4], 1
    %16 = vsyncpa %s15, 0
    loop: start=0, step=1, limit=4
    $region2: #{tpu_custom_call.1} parent=1 // loop_pre_header
      _
    $region3: #{tpu_custom_call.1} parent=1 // loop_header
      %s18 = sphi 0, %s22
      %p19 = scmp.ge.s32.totalorder %s18, 4
      %s28 = sphi 0, %s30
      %s31 = sphi 0, %s28
      %s32 = sphi 0, %s31
      %s48 = sphi 0, %s32
      %s52 = sphi 0, %s52
      %s54 = sphi 0, %s52
      %s55 = sphi 0, %s54
      %s69 = sphi 0, %s55
      %s73 = sphi 0, %s73
      %s75 = sphi 0, %s73
      %s76 = sphi 0, %s75
      %s90 = sphi 0, %s76
      %s94 = sphi 0, %s94
      %s96 = sphi 0, %s94
      %s97 = sphi 0, %s96
      %s111 = sphi 0, %s97
      %s115 = sphi 0, %s115
      %s117 = sphi 0, %s115
      %s118 = sphi 0, %s117
      %s132 = sphi 0, %s118
      %s138 = sphi 0, %s140
      %s141 = sphi 0, %s138
      %s142 = sphi 0, %s141
      %s158 = sphi 0, %s142
    $region4: #{tpu_custom_call.1} parent=1 // loop_header_branch
      %21 = sbr.rel (%p19) target = $region8
    $region5: #{tpu_custom_call.1} parent=1 // loop_body
      %s23 = ssub.s32 %s18, 1
      %s24 = ssub.s32 %s18, 2
      %s25 = sadd.s32 %s18, 1
      %s26 = ssub.s32 %s18, %s25
      %p27 = scmp.eq.s32.totalorder %s26, 0
      %s29 = sadd.s32 %s28, 1
      %s30 = scalar_select %p27, %s28, %s29
      %p33 = pneg %p27
      %p34 = scmp.eq.s32.totalorder %s18, 1
      %p35 = por %p33, %p34
      %p36 = scmp.ne.s32.totalorder %s28, %s31
      %p37 = scmp.eq.s32.totalorder %s18, 0
      %p38 = por %p36, %p37
      %p39 = scmp.ne.s32.totalorder %s28, %s31
      %p40 = scmp.eq.s32.totalorder %s23, 1
      %p41 = por %p39, %p40
      %p42 = scmp.ne.s32.totalorder %s31, %s32
      %p43 = scmp.eq.s32.totalorder %s23, 0
      %p44 = por %p42, %p43
      %p45 = scmp.ne.s32.totalorder %s31, %s32
      %p46 = scmp.eq.s32.totalorder %s24, 1
      %p47 = por %p45, %p46
      %p49 = scmp.ne.s32.totalorder %s32, %s48
      %p50 = scmp.eq.s32.totalorder %s24, 0
      %p51 = por %p49, %p50
      %s53 = sadd.s32 %s52, 1
      %p56 = scmp.eq.s32.totalorder %s18, 1
      %p57 = scmp.ne.s32.totalorder %s52, %s54
      %p58 = scmp.eq.s32.totalorder %s18, 0
      %p59 = por %p57, %p58
      %p60 = scmp.ne.s32.totalorder %s52, %s54
      %p61 = scmp.eq.s32.totalorder %s23, 1
      %p62 = por %p60, %p61
      %p63 = scmp.ne.s32.totalorder %s54, %s55
      %p64 = scmp.eq.s32.totalorder %s23, 0
      %p65 = por %p63, %p64
      %p66 = scmp.ne.s32.totalorder %s54, %s55
      %p67 = scmp.eq.s32.totalorder %s24, 1
      %p68 = por %p66, %p67
      %p70 = scmp.ne.s32.totalorder %s55, %s69
      %p71 = scmp.eq.s32.totalorder %s24, 0
      %p72 = por %p70, %p71
      %s74 = sadd.s32 %s73, 1
      %p77 = scmp.eq.s32.totalorder %s18, 1
      %p78 = scmp.ne.s32.totalorder %s73, %s75
      %p79 = scmp.eq.s32.totalorder %s18, 0
      %p80 = por %p78, %p79
      %p81 = scmp.ne.s32.totalorder %s73, %s75
      %p82 = scmp.eq.s32.totalorder %s23, 1
      %p83 = por %p81, %p82
      %p84 = scmp.ne.s32.totalorder %s75, %s76
      %p85 = scmp.eq.s32.totalorder %s23, 0
      %p86 = por %p84, %p85
      %p87 = scmp.ne.s32.totalorder %s75, %s76
      %p88 = scmp.eq.s32.totalorder %s24, 1
      %p89 = por %p87, %p88
      %p91 = scmp.ne.s32.totalorder %s76, %s90
      %p92 = scmp.eq.s32.totalorder %s24, 0
      %p93 = por %p91, %p92
      %s95 = sadd.s32 %s94, 1
      %p98 = scmp.eq.s32.totalorder %s18, 1
      %p99 = scmp.ne.s32.totalorder %s94, %s96
      %p100 = scmp.eq.s32.totalorder %s18, 0
      %p101 = por %p99, %p100
      %p102 = scmp.ne.s32.totalorder %s94, %s96
      %p103 = scmp.eq.s32.totalorder %s23, 1
      %p104 = por %p102, %p103
      %p105 = scmp.ne.s32.totalorder %s96, %s97
      %p106 = scmp.eq.s32.totalorder %s23, 0
      %p107 = por %p105, %p106
      %p108 = scmp.ne.s32.totalorder %s96, %s97
      %p109 = scmp.eq.s32.totalorder %s24, 1
      %p110 = por %p108, %p109
      %p112 = scmp.ne.s32.totalorder %s97, %s111
      %p113 = scmp.eq.s32.totalorder %s24, 0
      %p114 = por %p112, %p113
      %s116 = sadd.s32 %s115, 1
      %p119 = scmp.eq.s32.totalorder %s18, 1
      %p120 = scmp.ne.s32.totalorder %s115, %s117
      %p121 = scmp.eq.s32.totalorder %s18, 0
      %p122 = por %p120, %p121
      %p123 = scmp.ne.s32.totalorder %s115, %s117
      %p124 = scmp.eq.s32.totalorder %s23, 1
      %p125 = por %p123, %p124
      %p126 = scmp.ne.s32.totalorder %s117, %s118
      %p127 = scmp.eq.s32.totalorder %s23, 0
      %p128 = por %p126, %p127
      %p129 = scmp.ne.s32.totalorder %s117, %s118
      %p130 = scmp.eq.s32.totalorder %s24, 1
      %p131 = por %p129, %p130
      %p133 = scmp.ne.s32.totalorder %s118, %s132
      %p134 = scmp.eq.s32.totalorder %s24, 0
      %p135 = por %p133, %p134
      %s136 = ssub.s32 %s18, %s25
      %p137 = scmp.eq.s32.totalorder %s136, 0
      %s139 = sadd.s32 %s138, 1
      %s140 = scalar_select %p137, %s138, %s139
      %p143 = pneg %p137
      %p144 = scmp.eq.s32.totalorder %s18, 1
      %p145 = por %p143, %p144
      %p146 = scmp.ne.s32.totalorder %s138, %s141
      %p147 = scmp.eq.s32.totalorder %s18, 0
      %p148 = por %p146, %p147
      %p149 = scmp.ne.s32.totalorder %s138, %s141
      %p150 = scmp.eq.s32.totalorder %s23, 1
      %p151 = por %p149, %p150
      %p152 = scmp.ne.s32.totalorder %s141, %s142
      %p153 = scmp.eq.s32.totalorder %s23, 0
      %p154 = por %p152, %p153
      %p155 = scmp.ne.s32.totalorder %s141, %s142
      %p156 = scmp.eq.s32.totalorder %s24, 1
      %p157 = por %p155, %p156
      %p159 = scmp.ne.s32.totalorder %s142, %s158
      %p160 = scmp.eq.s32.totalorder %s24, 0
      %p161 = por %p159, %p160
      %p162 = scmp.le.s32.totalorder 1, %s18
      %p163 = scmp.lt.s32.totalorder %s18, 3
      %p164 = pnand %p162, %p163
      %p165 = pneg %p164
      // Predicated region
      $region9: #{tpu_custom_call.1} parent=5 // pred_check
        _
      $region10: #{tpu_custom_call.1} parent=5 // pred_check_branch
        %167 = sbr.rel (%p164) target = $region12
      $region11: #{tpu_custom_call.1} parent=5 // pred_region
        %s168 = ssub.s32 %s18, 1
        // Predicated region
        $region13: #{tpu_custom_call.1} parent=11 // pred_check
          %p169 = pneg %p65
        $region14: #{tpu_custom_call.1} parent=11 // pred_check_branch
          %171 = sbr.rel (%p169) target = $region16
        $region15: #{tpu_custom_call.1} parent=11 // pred_region
          %173 = vsyncadd [#allocation6], 0
          %s174 = sshll.u32 %s1, 4
          %s175 = int_to_ptr.hbm [resolvable:$true] %s174
          %s176 = sshll.u32 [#allocation5], 4
          %s177 = int_to_ptr.vmem [resolvable:$true] %s176
          %182 = dma.hbm_to_vmem [thread:$0]  %s175, 256, %s177, [#allocation6], 64, 64, 4
        $region16: #{tpu_custom_call.1} parent=11 // pred_fallthru
          _
        // Predicated region
        $region17: #{tpu_custom_call.1} parent=11 // pred_check
          %p183 = pneg %p86
        $region18: #{tpu_custom_call.1} parent=11 // pred_check_branch
          %185 = sbr.rel (%p183) target = $region20
        $region19: #{tpu_custom_call.1} parent=11 // pred_region
          _
        $region20: #{tpu_custom_call.1} parent=11 // pred_fallthru
          _
        // Predicated region
        $region21: #{tpu_custom_call.1} parent=11 // pred_check
          %p186 = pneg %p107
        $region22: #{tpu_custom_call.1} parent=11 // pred_check_branch
          %188 = sbr.rel (%p186) target = $region24
        $region23: #{tpu_custom_call.1} parent=11 // pred_region
          %190 = vsyncadd [#allocation6], 0
          %s191 = sshll.u32 %s3, 4
          %s192 = int_to_ptr.hbm [resolvable:$true] %s191
          %s193 = sshll.u32 [#allocation7], 4
          %s194 = int_to_ptr.vmem [resolvable:$true] %s193
          %199 = dma.hbm_to_vmem [thread:$0]  %s192, 256, %s194, [#allocation6], 64, 64, 4
        $region24: #{tpu_custom_call.1} parent=11 // pred_fallthru
          _
        // Predicated region
        $region25: #{tpu_custom_call.1} parent=11 // pred_check
          %p200 = pneg %p128
        $region26: #{tpu_custom_call.1} parent=11 // pred_check_branch
          %202 = sbr.rel (%p200) target = $region28
        $region27: #{tpu_custom_call.1} parent=11 // pred_region
          _
        $region28: #{tpu_custom_call.1} parent=11 // pred_fallthru
          _
      $region12: #{tpu_custom_call.1} parent=5 // pred_fallthru
        _
      %p203 = scmp.lt.s32.totalorder %s18, 2
      // Predicated region
      $region29: #{tpu_custom_call.1} parent=5 // pred_check
        %p204 = pneg %p203
      $region30: #{tpu_custom_call.1} parent=5 // pred_check_branch
        %206 = sbr.rel (%p204) target = $region32
      $region31: #{tpu_custom_call.1} parent=5 // pred_region
        // Predicated region
        $region33: #{tpu_custom_call.1} parent=31 // pred_check
          %p207 = pneg %p38
        $region34: #{tpu_custom_call.1} parent=31 // pred_check_branch
          %209 = sbr.rel (%p207) target = $region36
        $region35: #{tpu_custom_call.1} parent=31 // pred_region
          %s210 = sand.u32 %s28, 1
          %s211 = scalar_lea.sflag [#allocation3], %s210
          %s212 = sand.u32 %s28, 1
          %s213 = smul.addr %s212, 8
          %s214 = scalar_lea.vmem [#allocation2], %s213
          %216 = vsyncadd %s211, 0
          %s217 = smul.addr %s18, 8
          %s218 = scalar_lea.hbm %s0, %s217
          %s220 = sshll.u32 %s218, 4
          %s221 = int_to_ptr.hbm [resolvable:$true] %s220
          %s222 = sshll.u32 %s214, 4
          %s223 = int_to_ptr.vmem [resolvable:$true] %s222
          %225 = dma.hbm_to_vmem [thread:$0]  %s221, 128, %s223, %s211
        $region36: #{tpu_custom_call.1} parent=31 // pred_fallthru
          _
      $region32: #{tpu_custom_call.1} parent=5 // pred_fallthru
        _
      %p226 = scmp.le.s32.totalorder 1, %s18
      %p227 = scmp.lt.s32.totalorder %s18, 3
      %p228 = pnand %p226, %p227
      %p229 = pneg %p228
      // Predicated region
      $region37: #{tpu_custom_call.1} parent=5 // pred_check
        _
      $region38: #{tpu_custom_call.1} parent=5 // pred_check_branch
        %231 = sbr.rel (%p228) target = $region40
      $region39: #{tpu_custom_call.1} parent=5 // pred_region
        %s232 = ssub.s32 %s18, 1
        %s233 = sand.u32 %s31, 1
        %s234 = scalar_lea.sflag [#allocation3], %s233
        %s235 = sand.u32 %s31, 1
        %s236 = smul.addr %s235, 8
        %s237 = scalar_lea.vmem [#allocation2], %s236
        // Predicated region
        $region41: #{tpu_custom_call.1} parent=39 // pred_check
          %p238 = pneg %p44
        $region42: #{tpu_custom_call.1} parent=39 // pred_check_branch
          %240 = sbr.rel (%p238) target = $region44
        $region43: #{tpu_custom_call.1} parent=39 // pred_region
          %242 = dma.done %s234, 128
        $region44: #{tpu_custom_call.1} parent=39 // pred_fallthru
          _
        // Predicated region
        $region45: #{tpu_custom_call.1} parent=39 // pred_check
          %p243 = pneg %p65
        $region46: #{tpu_custom_call.1} parent=39 // pred_check_branch
          %245 = sbr.rel (%p243) target = $region48
        $region47: #{tpu_custom_call.1} parent=39 // pred_region
          %247 = dma.done [#allocation6], 256
        $region48: #{tpu_custom_call.1} parent=39 // pred_fallthru
          _
        // Predicated region
        $region49: #{tpu_custom_call.1} parent=39 // pred_check
          %p248 = pneg %p107
        $region50: #{tpu_custom_call.1} parent=39 // pred_check_branch
          %250 = sbr.rel (%p248) target = $region52
        $region51: #{tpu_custom_call.1} parent=39 // pred_region
          %252 = dma.done [#allocation6], 256
        $region52: #{tpu_custom_call.1} parent=39 // pred_fallthru
          _
        %s253 = sand.u32 %s31, 1
        %s254 = scalar_lea.sflag [#allocation3], %s253
        %s255 = sand.u32 %s31, 1
        %s256 = smul.addr %s255, 8
        %s257 = scalar_lea.vmem [#allocation2], %s256
        %p258 = pneg %p44
        %p259 = pneg %p41
        %p260 = pneg %p65
        %p261 = pneg %p62
        %p262 = pneg %p86
        %p263 = pneg %p83
        %p264 = pneg %p107
        %p265 = pneg %p104
        %p266 = pneg %p128
        %p267 = pneg %p125
        %p268 = pneg %p154
        %p269 = pneg %p151
        %s270 = sand.u32 %s141, 1
        %s271 = scalar_lea.sflag [#allocation4], %s270
        %s272 = sand.u32 %s141, 1
        %s273 = smul.addr %s272, 8
        %s274 = scalar_lea.vmem [#allocation8], %s273
        %v276 = vld [vmem:[%s237] sm:$0xff]
        %vm277 = vcmask 261120
        %v278 = vsel %vm277, %v276, 0.0
        %279 = vadd.xlane.f32.xlu0 %v278
        %v280 = vpop.xlane.xlu0 %279
        %v281 = vrcp.pop 32.0
        %v282 = vmul.f32 32.0, %v281
        %v283 = vsub.f32 1.0, %v282
        %v284 = vmul.f32 %v281, %v283
        %v285 = vadd.f32 %v281, %v284
        %vm286 = vweird.f32 %v281
        %v287 = vsel %vm286, %v281, %v285
        %v288 = vmul.f32 %v280, %v287
        %v289 = vsub.f32 %v276, %v288
        %v290 = vmul.f32 %v289, %v289
        %v291 = vsel %vm277, %v290, 0.0
        %292 = vadd.xlane.f32.xlu0 %v291
        %v293 = vpop.xlane.xlu0 %292
        %v294 = vmul.f32 %v293, %v287
        %v295 = vadd.f32 %v294, 1e-05
        %v296 = vrsqrt.pop %v295
        %v297 = vmul.f32 %v296, %v295
        %v298 = vmul.f32 %v297, %v296
        %v299 = vmul.f32 0.5, %v298
        %v300 = vsub.f32 1.5, %v299
        %v301 = vmul.f32 %v296, %v300
        %vm302 = vweird.f32 %v295
        %vm303 = vweird.f32 %v296
        %vm304 = vmor %vm302, %vm303
        %v305 = vsel %vm304, %v296, %v301
        %v306 = vmul.f32 %v289, %v305
        %v307 = vpack.c.bf16 %v306, %v306
        %v308 = vld [vmem:[#allocation5] sm:$0xf]
        %v309 = vld [vmem:[#allocation5 + $0x4] sm:$0xf]
        %v310 = vld [vmem:[#allocation5 + $0x8] sm:$0xf]
        %v311 = vld [vmem:[#allocation5 + $0xc] sm:$0xf]
        %v312 = vld [vmem:[%s2] sm:$0x1]
        %v314 = vperm.slane %v312, 0
        %v320 = vunpack.c.l.b16 %v308
        %v321 = vunpack.c.l.b16 %v309
        %v322 = vunpack.c.l.b16 %v310
        %v323 = vunpack.c.l.b16 %v311
        %v324 = vpack.c.b16 %v321, %v320
        %v325 = vpack.c.b16 %v323, %v322
        %v329 = vsel %vm277, %v307, 0
        %331 = vmatpush.bf16.msra.mxu0 0
        %332 = vmatpush.bf16.msra.mxu0 0
        %333 = vmatpush.bf16.msra.mxu0 0
        %334 = vmatpush.bf16.msra.mxu0 0
        %335 = vmatpush.bf16.msra.mxu0 0
        %336 = vmatpush.bf16.msra.mxu0 0
        %337 = vmatpush.bf16.msra.mxu0 %v325
        %338 = vmatpush.bf16.msra.mxu0 %v324
        %339 = vmatmul.bf16.gmra.mxu0 %v329
        %v340 = vpop.f32.mrf.mxu0
        %v341 = vadd.f32 %v314, %v340
        %v342 = vpop.f32.mrf.mxu0
        %343 = vdwg.mxu0
        %v344 = vsel %vm277, %v341, -inf
        %345 = vmax.xlane.f32.xlu0 %v344
        %v346 = vpop.xlane.xlu0 %345
        %v347 = vsub.f32 %v341, %v346
        %v348 = vmul.f32 %v347, 1.442695
        %v349 = vpow.pop %v348
        %v350 = vsel %vm277, %v349, 0.0
        %351 = vadd.xlane.f32.xlu0 %v350
        %v352 = vpop.xlane.xlu0 %351
        %v353 = vrcp.pop %v352
        %v354 = vmul.f32 %v349, %v353
        %v355 = vpack.c.bf16 %v354, %v354
        %v356 = vld [vmem:[#allocation7] sm:$0xf]
        %v357 = vld [vmem:[#allocation7 + $0x4] sm:$0xf]
        %v358 = vld [vmem:[#allocation7 + $0x8] sm:$0xf]
        %v359 = vld [vmem:[#allocation7 + $0xc] sm:$0xf]
        %v360 = vld [vmem:[%s4] sm:$0x1]
        %v362 = vperm.slane %v360, 0
        %v368 = vunpack.c.l.b16 %v356
        %v369 = vunpack.c.l.b16 %v357
        %v370 = vunpack.c.l.b16 %v358
        %v371 = vunpack.c.l.b16 %v359
        %v372 = vpack.c.b16 %v369, %v368
        %v373 = vpack.c.b16 %v371, %v370
        %v377 = vsel %vm277, %v355, 0
        %379 = vmatpush.bf16.msra.mxu0 0
        %380 = vmatpush.bf16.msra.mxu0 0
        %381 = vmatpush.bf16.msra.mxu0 0
        %382 = vmatpush.bf16.msra.mxu0 0
        %383 = vmatpush.bf16.msra.mxu0 0
        %384 = vmatpush.bf16.msra.mxu0 0
        %385 = vmatpush.bf16.msra.mxu0 %v373
        %386 = vmatpush.bf16.msra.mxu0 %v372
        %387 = vmatmul.bf16.gmra.mxu0 %v377
        %v388 = vpop.f32.mrf.mxu0
        %v389 = vadd.f32 %v362, %v388
        %v390 = vpop.f32.mrf.mxu0
        %391 = vdwg.mxu0
        %392 = vst [vmem:[%s274] sm:$0xff] %v389
        %s393 = sand.u32 %s141, 1
        %s394 = scalar_lea.sflag [#allocation4], %s393
        %s395 = sand.u32 %s141, 1
        %s396 = smul.addr %s395, 8
        %s397 = scalar_lea.vmem [#allocation8], %s396
        // Predicated region
        $region53: #{tpu_custom_call.1} parent=39 // pred_check
          %p398 = pneg %p151
        $region54: #{tpu_custom_call.1} parent=39 // pred_check_branch
          %400 = sbr.rel (%p398) target = $region56
        $region55: #{tpu_custom_call.1} parent=39 // pred_region
          %402 = vsyncadd %s394, 0
          %s403 = smul.addr %s23, 8
          %s404 = scalar_lea.hbm %s5, %s403
          %s406 = sshll.u32 %s397, 4
          %s407 = int_to_ptr.vmem [resolvable:$true] %s406
          %s408 = sshll.u32 %s404, 4
          %s409 = int_to_ptr.hbm [resolvable:$true] %s408
          %411 = dma.vmem_to_hbm [thread:$0]  %s407, 128, %s409, %s394
        $region56: #{tpu_custom_call.1} parent=39 // pred_fallthru
          _
      $region40: #{tpu_custom_call.1} parent=5 // pred_fallthru
        _
      %p412 = scmp.le.s32.totalorder 2, %s18
      // Predicated region
      $region57: #{tpu_custom_call.1} parent=5 // pred_check
        %p413 = pneg %p412
      $region58: #{tpu_custom_call.1} parent=5 // pred_check_branch
        %415 = sbr.rel (%p413) target = $region60
      $region59: #{tpu_custom_call.1} parent=5 // pred_region
        %s416 = ssub.s32 %s18, 2
        // Predicated region
        $region61: #{tpu_custom_call.1} parent=59 // pred_check
          %p417 = pneg %p157
        $region62: #{tpu_custom_call.1} parent=59 // pred_check_branch
          %419 = sbr.rel (%p417) target = $region64
        $region63: #{tpu_custom_call.1} parent=59 // pred_region
          %s420 = sand.u32 %s142, 1
          %s421 = scalar_lea.sflag [#allocation4], %s420
          %s422 = sand.u32 %s142, 1
          %s423 = smul.addr %s422, 8
          %s424 = scalar_lea.vmem [#allocation8], %s423
          %426 = dma.done %s421, 128
        $region64: #{tpu_custom_call.1} parent=59 // pred_fallthru
          _
      $region60: #{tpu_custom_call.1} parent=5 // pred_fallthru
        _
    $region6: #{tpu_custom_call.1} parent=1 // loop_footer
      %s22 = sadd.s32 1, %s18
    $region7: #{tpu_custom_call.1} parent=1 // loop_footer_branch
      %17 = sbr.rel target = $region3
    $region8: #{tpu_custom_call.1} parent=1 // loop_exit
      _
    %427 = vsyncpa [#allocation3], 1
    %s428 = scalar_lea.sflag [#allocation3], 1
    %429 = vsyncpa %s428, 1
    %430 = vsyncpa [#allocation6], 1
    %431 = vsyncpa [#allocation4], 1
    %s432 = scalar_lea.sflag [#allocation4], 1
    %433 = vsyncpa %s432, 1

</llo_original>
